<compile_context>
chip_gen: v5e
topology: v5e:2x2
jax: 0.10.0
libtpu: 0.0.40
codegen_flags: <defaults>
</compile_context>

<pallas_src>
import jax
import jax.numpy as jnp
from jax.experimental import pallas as pl
from jax.experimental.pallas import tpu as pltpu

HIDDEN = 32


def mlp_kernel(xT_ref, slab_ref, o_ref):
    H = xT_ref.shape[0]
    xT = xT_ref[...]                            # (H, TM)   rows -> lanes
    w1t = slab_ref[:, 0:H]                      # (H, H)    = W1^T
    b1c = slab_ref[:, H:H + 1]                  # (H, 1)    fc1 bias (column)
    w2c = slab_ref[:, H + 1:H + 2]              # (H, 1)    fc2 weight (column)
    b2 = slab_ref[0:1, H + 2:H + 3]             # (1, 1)    fc2 bias

    # fc1 on the MXU (output is H x TM -> fully lane-dense), f32 accumulate.
    h = jnp.dot(w1t, xT, preferred_element_type=jnp.float32) + b1c
    h = jnp.maximum(h, 0.0)                     # ReLU
    # Dropout(p=0.1): identity in eval mode.
    # fc2 (N=1) on VPU + cross-sublane reduce instead of an N=1 MXU matmul.
    o_ref[...] = jnp.sum(h * w2c, axis=0, keepdims=True) + b2   # (1, TM)


def pack_params(params, H):
    """Pack W1^T | b1 | w2 | b2 into one (H, H+3) f32 slab (single DMA)."""
    w1, b1, w2, b2 = params["w1"], params["b1"], params["w2"], params["b2"]
    return jnp.concatenate(
        [
            w1.T.astype(jnp.float32),                               # (H, H)
            b1.reshape(H, 1).astype(jnp.float32),                   # (H, 1)
            w2.reshape(H, 1).astype(jnp.float32),                   # (H, 1)
            jnp.broadcast_to(b2.reshape(1, 1).astype(jnp.float32), (H, 1)),
        ],
        axis=1,
    )


def mlp_forward(x, params, *, tile_m=512):
    B, S, H = x.shape
    M = B * S

    xT = x.reshape(M, H).astype(jnp.float32).T          # (H, M): rows -> lanes
    slab = pack_params(params, H)                        # (H, H+3)

    # Row tiling: whole slab in one step when small, else 512-row lane tiles
    # (multiple of 128 -> unmasked stores); pad the lane axis if needed.
    tm = M if M <= tile_m else tile_m
    n_tiles = pl.cdiv(M, tm)
    Mp = n_tiles * tm
    if Mp != M:
        xT = jnp.pad(xT, ((0, 0), (0, Mp - M)))

    flops = 2 * M * H * H + 2 * M * H
    bytes_accessed = 4 * (H * Mp + slab.size + Mp)

    out = pl.pallas_call(
        mlp_kernel,
        out_shape=jax.ShapeDtypeStruct((1, Mp), jnp.float32),
        grid_spec=pltpu.PrefetchScalarGridSpec(
            num_scalar_prefetch=0,
            grid=(n_tiles,),
            in_specs=[
                pl.BlockSpec((H, tm), lambda i: (0, i)),        # x^T lane tile
                pl.BlockSpec(slab.shape, lambda i: (0, 0)),     # slab resident
            ],
            out_specs=pl.BlockSpec((1, tm), lambda i: (0, i)),  # lane-dense out
        ),
        compiler_params=pltpu.CompilerParams(
            dimension_semantics=("parallel",),      # v7x: split rows across TCs
        ),
        cost_estimate=pl.CostEstimate(
            flops=flops, transcendentals=0, bytes_accessed=bytes_accessed
        ),
    )(xT, slab)

    return out[0, :M].reshape(B, S, 1)


# ---------------- pure-JAX reference (for correctness check) ----------------
def mlp_reference(x, p):
    h = jnp.maximum(x @ p["w1"] + p["b1"], 0.0)
    return h @ p["w2"] + p["b2"]


def init_params(key, H):
    k1, k2, k3, k4 = jax.random.split(key, 4)
    return {
        "w1": jax.random.normal(k1, (H, H), jnp.float32) * 0.1,   # (in, out)
        "b1": jax.random.normal(k2, (1, H), jnp.float32) * 0.1,
        "w2": jax.random.normal(k3, (H, 1), jnp.float32) * 0.1,
        "b2": jax.random.normal(k4, (1, 1), jnp.float32) * 0.1,
    }


if __name__ == "__main__":
    B, S, H = 2, 8, HIDDEN
    key = jax.random.PRNGKey(0)
    kx, kp = jax.random.split(key)
    x = jax.random.normal(kx, (B, S, H), jnp.float32)
    params = init_params(kp, H)

    out = mlp_forward(x, params)
    out = jax.block_until_ready(out)

    ref = mlp_reference(x, params)
    assert out.shape == (B, S, 1)
    assert jnp.allclose(out, ref, atol=1e-5, rtol=1e-5), "mismatch vs reference"

    print("KERNEL_OK")
</pallas_src>

<mosaic_0001>
module attributes {stable_mosaic.version = 11 : i64} {
  func.func @mlp_kernel(%arg0: i32, %arg1: memref<32x16xf32, #tpu.memory_space<vmem>>, %arg2: memref<32x35xf32, #tpu.memory_space<vmem>>, %arg3: memref<1x16xf32, #tpu.memory_space<vmem>>) attributes {dimension_semantics = [#tpu.dimension_semantics<parallel>], iteration_bounds = array<i64: 1>, scalar_prefetch = 0 : i64, scratch_operands = 0 : i64, tpu.core_type = #tpu.core_type<tc>, window_params = [{transform_indices = @transform_0, window_bounds = array<i64: 32, 16>}, {pipeline_mode = #tpu.pipeline_mode<synchronous>, transform_indices = @transform_1, window_bounds = array<i64: 32, 35>}, {transform_indices = @transform_2, window_bounds = array<i64: 1, 16>}]} {
    %c0 = arith.constant 0 : index
    %c0_0 = arith.constant 0 : index
    %0 = vector.load %arg1[%c0, %c0_0] : memref<32x16xf32, #tpu.memory_space<vmem>>, vector<32x16xf32>
    %c0_1 = arith.constant 0 : index
    %c0_2 = arith.constant 0 : index
    %1 = vector.load %arg2[%c0_1, %c0_2] : memref<32x35xf32, #tpu.memory_space<vmem>>, vector<32x32xf32>
    %c0_3 = arith.constant 0 : index
    %c32 = arith.constant 32 : index
    %2 = vector.load %arg2[%c0_3, %c32] : memref<32x35xf32, #tpu.memory_space<vmem>>, vector<32x1xf32>
    %c0_4 = arith.constant 0 : index
    %c33 = arith.constant 33 : index
    %3 = vector.load %arg2[%c0_4, %c33] : memref<32x35xf32, #tpu.memory_space<vmem>>, vector<32x1xf32>
    %c0_5 = arith.constant 0 : index
    %c34 = arith.constant 34 : index
    %4 = vector.load %arg2[%c0_5, %c34] : memref<32x35xf32, #tpu.memory_space<vmem>>, vector<1x1xf32>
    %cst = arith.constant dense<0.000000e+00> : vector<32x16xf32>
    %5 = tpu.matmul %1, %0, %cst {dimension_numbers = #tpu.dot_dimension_numbers<[1], [0], [0], [1], [0, 0, 1, 1], [], []>} : vector<32x32xf32>, vector<32x16xf32>, vector<32x16xf32> -> vector<32x16xf32>
    %6 = vector.broadcast %2 : vector<32x1xf32> to vector<32x16xf32>
    %7 = arith.addf %5, %6 : vector<32x16xf32>
    %cst_6 = arith.constant 0.000000e+00 : f32
    %8 = vector.broadcast %cst_6 : f32 to vector<32x16xf32>
    %9 = arith.maximumf %7, %8 : vector<32x16xf32>
    %10 = vector.broadcast %3 : vector<32x1xf32> to vector<32x16xf32>
    %11 = arith.mulf %9, %10 : vector<32x16xf32>
    %cst_7 = arith.constant dense<0.000000e+00> : vector<16xf32>
    %12 = vector.multi_reduction <add>, %11, %cst_7 [0] : vector<32x16xf32> to vector<16xf32>
    %13 = vector.shape_cast %12 : vector<16xf32> to vector<1x16xf32>
    %14 = vector.broadcast %4 : vector<1x1xf32> to vector<1x16xf32>
    %15 = arith.addf %13, %14 : vector<1x16xf32>
    %c0_8 = arith.constant 0 : index
    %c0_9 = arith.constant 0 : index
    %16 = vector.load %arg3[%c0_8, %c0_9] : memref<1x16xf32, #tpu.memory_space<vmem>>, vector<1x16xf32>
    tpu.vector_store %arg3[%c0_8, %c0_9], %15 {strides = array<i32>} : memref<1x16xf32, #tpu.memory_space<vmem>>, vector<1x16xf32>,
    return
  }
  func.func @transform_0(%arg0: i32) -> (i32, i32) {
    %c0_i32 = arith.constant 0 : i32
    %c0_i32_0 = arith.constant 0 : i32
    return %c0_i32, %arg0 : i32, i32
  }
  func.func @transform_1(%arg0: i32) -> (i32, i32) {
    %c0_i32 = arith.constant 0 : i32
    %c0_i32_0 = arith.constant 0 : i32
    %c0_i32_1 = arith.constant 0 : i32
    return %c0_i32, %c0_i32_0 : i32, i32
  }
  func.func @transform_2(%arg0: i32) -> (i32, i32) {
    %c0_i32 = arith.constant 0 : i32
    %c0_i32_0 = arith.constant 0 : i32
    return %c0_i32, %arg0 : i32, i32
  }
}

</mosaic_0001>

<llo_original>
// kernel: tpu_custom_call.1
$region0: #{tpu_custom_call.1}
  #allocation0 [shape = 'u32[]', space=smem, size = 0x4, offset = 0x4, fixed_abs, tag = 'smem constant byte address 0x4 - core index']
  #allocation1 [shape = 'u32[72,128]{1,0:T(1,128)}', space=vmem, size = 0x9000, scoped, tag = 'internal scratch']
  %s0 = inlined_call_operand.vmem [shape: f32[32,16], index: 0, kind: input, shape index: {}]
  %s1 = inlined_call_operand.vmem [shape: f32[32,35], index: 1, kind: input, shape index: {}]
  %s2 = inlined_call_operand.hbm [shape: f32[1,16], index: 2, kind: output, shape index: {}]
  %s3 = sld [smem:[#allocation0]]
  $region18: #{tpu_custom_call.1} parent=0
    _
  %s5 = ssub.s32 1, %s3
  %s6 = scalar_select 0, %s5, %s3
  $region1: #{tpu_custom_call.1} parent=0
    #allocation2 [shape = 'u8[512]{0}', space=vmem, size = 0x400, scoped, tag = 'output window, operand 0, single buffered']
    #allocation3 [shape = 's32[1]{0}', space=sflag, size = 0x4, scoped, tag = 'scoped memory for tpu_custom_call.1']
    %7 = vsyncpa [#allocation3], 0
    // Predicated region
    $region2: #{tpu_custom_call.1} parent=1 // pred_check
      _
    $region3: #{tpu_custom_call.1} parent=1 // pred_check_branch
      %9 = sbr.rel (0) target = $region5
    $region4: #{tpu_custom_call.1} parent=1 // pred_region
      _
    $region5: #{tpu_custom_call.1} parent=1 // pred_fallthru
      _
    // Predicated region
    $region6: #{tpu_custom_call.1} parent=1 // pred_check
      _
    $region7: #{tpu_custom_call.1} parent=1 // pred_check_branch
      %11 = sbr.rel (0) target = $region9
    $region8: #{tpu_custom_call.1} parent=1 // pred_region
      _
    $region9: #{tpu_custom_call.1} parent=1 // pred_fallthru
      _
    %v12 = vld [vmem:[%s0] sm:$0xff]
    %v13 = vld [vmem:[%s0 + $0x8] sm:$0xff]
    %v14 = vld [vmem:[%s0 + $0x10] sm:$0xff]
    %v15 = vld [vmem:[%s0 + $0x18] sm:$0xff]
    %v16 = vld [vmem:[%s1] sm:$0xff]
    %v17 = vld [vmem:[%s1 + $0x8] sm:$0xff]
    %v18 = vld [vmem:[%s1 + $0x10] sm:$0xff]
    %v19 = vld [vmem:[%s1 + $0x18] sm:$0xff]
    %v20 = vld [vmem:[%s1] sm:$0x1]
    %22 = vset.pattern.permute.xlu0 32
    %23 = vperm.xlu0 %22, %v16
    %v24 = vpop.permute.xlu0 %23
    %27 = vset.pattern.permute.xlu0 32
    %28 = vperm.xlu0 %27, %v17
    %v29 = vpop.permute.xlu0 %28
    %32 = vset.pattern.permute.xlu0 32
    %33 = vperm.xlu0 %32, %v18
    %v34 = vpop.permute.xlu0 %33
    %37 = vset.pattern.permute.xlu0 32
    %38 = vperm.xlu0 %37, %v19
    %v39 = vpop.permute.xlu0 %38
    %vm41 = vcmask 261120
    %v42 = vsel %vm41, %v16, 0
    %v44 = vsel %vm41, %v17, 0
    %v46 = vsel %vm41, %v18, 0
    %v48 = vsel %vm41, %v19, 0
    %50 = vmatpush.msra.mxu0 0.0
    %51 = vmatpush.msra.mxu0 0.0
    %52 = vmatpush.msra.mxu0 0.0
    %53 = vmatpush.msra.mxu0 0.0
    %54 = vmatpush.msra.mxu0 0.0
    %55 = vmatpush.msra.mxu0 0.0
    %56 = vmatpush.msra.mxu0 0.0
    %57 = vmatpush.msra.mxu0 0.0
    %58 = vmatpush.msra.mxu0 0.0
    %59 = vmatpush.msra.mxu0 0.0
    %60 = vmatpush.msra.mxu0 0.0
    %61 = vmatpush.msra.mxu0 0.0
    %62 = vmatpush.msra.mxu0 %v15
    %63 = vmatpush.msra.mxu0 %v14
    %64 = vmatpush.msra.mxu0 %v13
    %65 = vmatpush.msra.mxu0 %v12
    %66 = vmatmul.f32.gmra.mxu0 %v42
    %v67 = vpop.f32.mrf.mxu0
    %v68 = vadd.f32 %v24, %v67
    %69 = vmatmul.f32.gmra.mxu0 %v44
    %v70 = vpop.f32.mrf.mxu0
    %v71 = vadd.f32 %v29, %v70
    %72 = vmatmul.f32.gmra.mxu0 %v46
    %v73 = vpop.f32.mrf.mxu0
    %v74 = vadd.f32 %v34, %v73
    %75 = vmatmul.f32.gmra.mxu0 %v48
    %v76 = vpop.f32.mrf.mxu0
    %v77 = vadd.f32 %v39, %v76
    %78 = vdwg.mxu0
    %v79 = vmax.f32 %v68, 0.0
    %v80 = vmax.f32 %v71, 0.0
    %v81 = vmax.f32 %v74, 0.0
    %v82 = vmax.f32 %v77, 0.0
    %83 = vset.pattern.permute.xlu0 33
    %84 = vperm.xlu0 %83, %v16
    %v85 = vpop.permute.xlu0 %84
    %87 = vset.pattern.permute.xlu0 33
    %88 = vperm.xlu0 %87, %v17
    %v89 = vpop.permute.xlu0 %88
    %91 = vset.pattern.permute.xlu0 33
    %92 = vperm.xlu0 %91, %v18
    %v93 = vpop.permute.xlu0 %92
    %95 = vset.pattern.permute.xlu0 33
    %96 = vperm.xlu0 %95, %v19
    %v97 = vpop.permute.xlu0 %96
    %v99 = vmul.f32 %v79, %v85
    %v100 = vmul.f32 %v80, %v89
    %v101 = vmul.f32 %v81, %v93
    %v102 = vmul.f32 %v82, %v97
    %vm103 = vcmask 130048
    %v104 = vsel %vm103, %v99, 0.0
    %v105 = vsel %vm103, %v100, 0.0
    %v106 = vadd.f32 %v104, %v105
    %v107 = vsel %vm103, %v101, 0.0
    %v108 = vadd.f32 %v106, %v107
    %v109 = vsel %vm103, %v102, 0.0
    %v110 = vadd.f32 %v108, %v109
    %v111 = vrot.slane %v110, 4
    %v112 = vadd.f32 %v110, %v111
    %v113 = vrot.slane %v112, 2
    %v114 = vadd.f32 %v112, %v113
    %v115 = vrot.slane %v114, 1
    %v116 = vadd.f32 %v114, %v115
    %118 = vset.pattern.permute.xlu0 34
    %119 = vperm.xlu0 %118, %v20
    %v120 = vpop.permute.xlu0 %119
    %v122 = vadd.f32 %v116, %v120
    %vm123 = vcmask 122880
    %124 = vst.msk [vmem:[#allocation2] sm:$0x1] %vm123, %v122
    // Predicated region
    $region10: #{tpu_custom_call.1} parent=1 // pred_check
      _
    $region11: #{tpu_custom_call.1} parent=1 // pred_check_branch
      %126 = sbr.rel (0) target = $region13
    $region12: #{tpu_custom_call.1} parent=1 // pred_region
      %128 = vsyncadd [#allocation3], 0
      %s130 = sshll.u32 [#allocation2], 4
      %s131 = int_to_ptr.vmem [resolvable:$true] %s130
      %s132 = sshll.u32 %s2, 4
      %s133 = int_to_ptr.hbm [resolvable:$true] %s132
      %135 = dma.vmem_to_hbm [thread:$0]  %s131, 16, %s133, [#allocation3]
    $region13: #{tpu_custom_call.1} parent=1 // pred_fallthru
      _
    // Predicated region
    $region14: #{tpu_custom_call.1} parent=1 // pred_check
      _
    $region15: #{tpu_custom_call.1} parent=1 // pred_check_branch
      %137 = sbr.rel (0) target = $region17
    $region16: #{tpu_custom_call.1} parent=1 // pred_region
      %139 = dma.done [#allocation3], 16
    $region17: #{tpu_custom_call.1} parent=1 // pred_fallthru
      _
    %140 = vsyncpa [#allocation3], 1

</llo_original>
